<compile_context>
chip_gen: v7x
topology: tpu7x:2x2x1
jax: 0.10.0
libtpu: 0.0.40
codegen_flags: <defaults>
</compile_context>

<pallas_src>
import jax
import jax.numpy as jnp
from jax import lax
from jax.experimental import pallas as pl
from jax.experimental.pallas import tpu as pltpu

FOCAL_GAMMA = 2.0   # gamma == 2: implemented as q*q below
FOCAL_ALPHA = 0.35


def _round_up(n, m):
    return ((n + m - 1) // m) * m


def _make_kernel(T, tile_t, need_mask):
    """Builds the tiled reward-head + focal-loss kernel (constants baked in)."""

    def kernel(x_ref, w_ref, tgt_ref, bias_ref, acc_ref):
        # x_ref:    (1, tile_t, H) VMEM, native (bf16) dtype, streamed
        # w_ref:    (H, 1)         VMEM, same dtype as x (resident across grid)
        # tgt_ref:  (B,)           SMEM, f32 per-sequence target
        # bias_ref: (1, 1)         SMEM, f32 reward-head bias
        # acc_ref:  (1, tile_t, 1) VMEM f32 output block for this batch row,
        #           revisited across the T-tile axis -> per-row-slot partials
        b = pl.program_id(0)
        i = pl.program_id(1)

        @pl.when(i == 0)
        def _init():
            acc_ref[...] = jnp.zeros_like(acc_ref)

        x = x_ref[0]                       # (tile_t, H) bf16
        w = w_ref[...]                     # (H, 1)      bf16
        bias = bias_ref[0, 0]
        t = tgt_ref[b]                     # scalar f32 target for this sequence
        alpha_t = FOCAL_ALPHA * t + (1.0 - FOCAL_ALPHA) * (1.0 - t)   # scalar

        # Reward head: MXU matvec with f32 accumulation -> (tile_t, 1) logits.
        logits = jnp.dot(x, w, preferred_element_type=jnp.float32) + bias

        # One shared exp(-|x|) feeds both the stable sigmoid and the stable
        # BCE-with-logits (matches torch.sigmoid + binary_cross_entropy_with_logits).
        e = jnp.exp(-jnp.abs(logits))
        inv_1pe = pl.reciprocal(1.0 + e, approx=True)        # EUP vrcp, nearly free
        p = jnp.where(logits >= 0.0, inv_1pe, e * inv_1pe)   # sigmoid(logits)
        ce = jnp.maximum(logits, 0.0) - logits * t + jnp.log1p(e)

        p_t = p * t + (1.0 - p) * (1.0 - t)
        q = 1.0 - p_t
        contrib = (alpha_t * ce) * (q * q)                   # (tile_t, 1) f32

        if need_mask:  # static: only traced when the last T block is ragged
            row = i * tile_t + lax.broadcasted_iota(jnp.int32, (tile_t, 1), 0)
            contrib = jnp.where(row < T, contrib, 0.0)       # select kills garbage/NaN

        acc_ref[0] += contrib                                # elementwise, no XLU reduce

    return kernel


def reward_model_wrapper_forward(x, w, b, target_reward, *, target_block_bytes=4 << 20):
    """Returns {'loss': scalar} like RewardModelWrapper.forward.

    x: (B, T, H) hidden states (bf16 preferred, kept in native dtype),
    w: (H,) reward-head weight, b: () bias, target_reward: (B,) in [0, 1].
    """
    B, T, H = x.shape
    itemsize = jnp.dtype(x.dtype).itemsize

    # Auto-size the T tile so one x block is ~target_block_bytes.
    rows = max(8, target_block_bytes // (H * itemsize))
    tile_t = _round_up(rows, 8)
    if tile_t >= T:
        tile_t = T                          # single full-extent block along T
    num_t = -(-T // tile_t)                 # cdiv
    need_mask = (num_t * tile_t) != T
    grid = (B, num_t)

    w_col = w.reshape(H, 1).astype(x.dtype)
    tgt = target_reward.reshape(B).astype(jnp.float32)
    bias = jnp.asarray(b, jnp.float32).reshape(1, 1)

    # VMEM budget: double-buffered x block + double-buffered acc block + weight.
    x_block_bytes = tile_t * H * itemsize
    vmem_need = 2 * x_block_bytes + 2 * tile_t * 4 + 2 * H * itemsize + (2 << 20)
    vmem_limit = int(min(max(vmem_need, 16 << 20), 48 << 20))

    kernel = _make_kernel(T, tile_t, need_mask)

    acc = pl.pallas_call(
        kernel,
        out_shape=jax.ShapeDtypeStruct((B, tile_t, 1), jnp.float32),
        grid=grid,
        in_specs=[
            pl.BlockSpec((1, tile_t, H), lambda bb, ii: (bb, ii, 0)),   # x (streamed)
            pl.BlockSpec((H, 1), lambda bb, ii: (0, 0)),                # weight (resident)
            pl.BlockSpec(memory_space=pltpu.MemorySpace.SMEM),          # targets (B,)
            pl.BlockSpec(memory_space=pltpu.MemorySpace.SMEM),          # bias (1,1)
        ],
        out_specs=pl.BlockSpec((1, tile_t, 1), lambda bb, ii: (bb, 0, 0)),
        compiler_params=pltpu.CompilerParams(
            dimension_semantics=("parallel", "arbitrary"),  # batch rows || , T-tiles reduce
            vmem_limit_bytes=vmem_limit,
        ),
    )(x, w_col, tgt, bias)

    loss = jnp.sum(acc) / (B * T)           # tree-reduced mean in the wrapper
    return {"loss": loss}


def _reference_forward(x, w, b, target_reward):
    """Pure-JAX f32 reference mirroring the PyTorch wrapper semantics."""
    B, T, H = x.shape
    xf = x.astype(jnp.float32)
    wf = w.astype(jnp.float32)
    logits = jnp.einsum("bth,h->bt", xf, wf) + jnp.asarray(b, jnp.float32)
    tgt = jnp.broadcast_to(target_reward.reshape(B, 1).astype(jnp.float32), (B, T))
    p = jax.nn.sigmoid(logits)
    ce = (jnp.maximum(logits, 0.0) - logits * tgt
          + jnp.log1p(jnp.exp(-jnp.abs(logits))))
    p_t = p * tgt + (1.0 - p) * (1.0 - tgt)
    focal_term = (1.0 - p_t) ** FOCAL_GAMMA
    alpha_t = FOCAL_ALPHA * tgt + (1.0 - FOCAL_ALPHA) * (1.0 - tgt)
    return jnp.mean(alpha_t * focal_term * ce)


if __name__ == "__main__":
    B, T, H = 2, 8, 32
    key = jax.random.PRNGKey(0)
    kx, kw, kb, kt = jax.random.split(key, 4)

    # Deterministic synthetic inputs / parameters (no checkpoint loading).
    # x and the reward-head weight stay bf16 (native dtype) end-to-end.
    x = jax.random.normal(kx, (B, T, H), dtype=jnp.float32).astype(jnp.bfloat16)
    w = (0.1 * jax.random.normal(kw, (H,), dtype=jnp.float32)).astype(jnp.bfloat16)
    b = 0.05 * jax.random.normal(kb, (), dtype=jnp.float32)
    target_reward = (jax.random.uniform(kt, (B,)) > 0.5).astype(jnp.float32)

    out = reward_model_wrapper_forward(x, w, b, target_reward)
    loss = jax.block_until_ready(out["loss"])

    ref = jax.block_until_ready(_reference_forward(x, w, b, target_reward))
    # approx-reciprocal sigmoid + bf16 MXU accumulation -> modest tolerance
    assert jnp.allclose(loss, ref, rtol=5e-3, atol=1e-4), (loss, ref)

    print("KERNEL_OK")
</pallas_src>

<mosaic_0001>
module attributes {stable_mosaic.version = 11 : i64} {
  func.func @kernel(%arg0: i32, %arg1: i32, %arg2: memref<1x8x32xbf16, #tpu.memory_space<vmem>>, %arg3: memref<32x1xbf16, #tpu.memory_space<vmem>>, %arg4: memref<2xf32, #tpu.memory_space<smem>>, %arg5: memref<1x1xf32, #tpu.memory_space<smem>>, %arg6: memref<1x8x1xf32, #tpu.memory_space<vmem>>) attributes {dimension_semantics = [#tpu.dimension_semantics<parallel>, #tpu.dimension_semantics<arbitrary>], iteration_bounds = array<i64: 2, 1>, scalar_prefetch = 0 : i64, scratch_operands = 0 : i64, tpu.core_type = #tpu.core_type<tc>, window_params = [{transform_indices = @transform_0, window_bounds = array<i64: 1, 8, 32>}, {pipeline_mode = #tpu.pipeline_mode<synchronous>, transform_indices = @transform_1, window_bounds = array<i64: 32, 1>}, {transform_indices = @transform_2, window_bounds = array<i64: 2>}, {transform_indices = @transform_3, window_bounds = array<i64: 1, 1>}, {transform_indices = @transform_4, window_bounds = array<i64: 1, 8, 1>}]} {
    %c0_i32 = arith.constant 0 : i32
    %0 = arith.cmpi eq, %arg1, %c0_i32 : i32
    %1 = arith.extui %0 : i1 to i32
    %c0_i32_0 = arith.constant 0 : i32
    %2 = arith.cmpi ne, %1, %c0_i32_0 : i32
    scf.if %2 {
      %cst_23 = arith.constant 0.000000e+00 : f32
      %54 = vector.broadcast %cst_23 : f32 to vector<1x8x1xf32>
      %c0_24 = arith.constant 0 : index
      %c0_25 = arith.constant 0 : index
      %c0_26 = arith.constant 0 : index
      %55 = vector.load %arg6[%c0_24, %c0_25, %c0_26] : memref<1x8x1xf32, #tpu.memory_space<vmem>>, vector<1x8x1xf32>
      tpu.vector_store %arg6[%c0_24, %c0_25, %c0_26], %54 {strides = array<i32>} : memref<1x8x1xf32, #tpu.memory_space<vmem>>, vector<1x8x1xf32>,
    } else {
    }
    %c0 = arith.constant 0 : index
    %c0_1 = arith.constant 0 : index
    %c0_2 = arith.constant 0 : index
    %3 = vector.load %arg2[%c0, %c0_1, %c0_2] : memref<1x8x32xbf16, #tpu.memory_space<vmem>>, vector<1x8x32xbf16>
    %4 = vector.shape_cast %3 : vector<1x8x32xbf16> to vector<8x32xbf16>
    %c0_3 = arith.constant 0 : index
    %c0_4 = arith.constant 0 : index
    %5 = vector.load %arg3[%c0_3, %c0_4] : memref<32x1xbf16, #tpu.memory_space<vmem>>, vector<32x1xbf16>
    %c0_5 = arith.constant 0 : index
    %c0_6 = arith.constant 0 : index
    %6 = memref.load %arg5[%c0_5, %c0_6] : memref<1x1xf32, #tpu.memory_space<smem>>
    %7 = arith.index_cast %arg0 : i32 to index
    %8 = memref.load %arg4[%7] : memref<2xf32, #tpu.memory_space<smem>>
    %cst = arith.constant 3.500000e-01 : f32
    %9 = arith.mulf %cst, %8 : f32
    %cst_7 = arith.constant 1.000000e+00 : f32
    %10 = arith.subf %cst_7, %8 : f32
    %cst_8 = arith.constant 6.500000e-01 : f32
    %11 = arith.mulf %cst_8, %10 : f32
    %12 = arith.addf %9, %11 : f32
    %cst_9 = arith.constant dense<0.000000e+00> : vector<8x1xf32>
    %13 = tpu.matmul %4, %5, %cst_9 {dimension_numbers = #tpu.dot_dimension_numbers<[1], [0], [0], [1], [0, 0, 1, 1], [], []>} : vector<8x32xbf16>, vector<32x1xbf16>, vector<8x1xf32> -> vector<8x1xf32>
    %14 = vector.broadcast %6 : f32 to vector<8x1xf32>
    %15 = arith.addf %13, %14 : vector<8x1xf32>
    %16 = math.absf %15 : vector<8x1xf32>
    %cst_10 = arith.constant 0.000000e+00 : f32
    %17 = vector.broadcast %cst_10 : f32 to vector<8x1xf32>
    %18 = arith.subf %17, %16 : vector<8x1xf32>
    %19 = math.exp %18 : vector<8x1xf32>
    %cst_11 = arith.constant 1.000000e+00 : f32
    %20 = vector.broadcast %cst_11 : f32 to vector<8x1xf32>
    %21 = arith.addf %20, %19 : vector<8x1xf32>
    %22 = tpu.reciprocal %21 {approx = true} : vector<8x1xf32> -> vector<8x1xf32>
    %cst_12 = arith.constant 0.000000e+00 : f32
    %23 = vector.broadcast %cst_12 : f32 to vector<8x1xf32>
    %24 = arith.cmpf oge, %15, %23 : vector<8x1xf32>
    %25 = arith.mulf %19, %22 : vector<8x1xf32>
    %26 = arith.select %24, %22, %25 : vector<8x1xi1>, vector<8x1xf32>
    %cst_13 = arith.constant 0.000000e+00 : f32
    %27 = vector.broadcast %cst_13 : f32 to vector<8x1xf32>
    %28 = arith.maximumf %15, %27 : vector<8x1xf32>
    %29 = vector.broadcast %8 : f32 to vector<8x1xf32>
    %30 = arith.mulf %15, %29 : vector<8x1xf32>
    %31 = arith.subf %28, %30 : vector<8x1xf32>
    %32 = math.log1p %19 : vector<8x1xf32>
    %33 = arith.addf %31, %32 : vector<8x1xf32>
    %34 = vector.broadcast %8 : f32 to vector<8x1xf32>
    %35 = arith.mulf %26, %34 : vector<8x1xf32>
    %cst_14 = arith.constant 1.000000e+00 : f32
    %36 = vector.broadcast %cst_14 : f32 to vector<8x1xf32>
    %37 = arith.subf %36, %26 : vector<8x1xf32>
    %cst_15 = arith.constant 1.000000e+00 : f32
    %38 = arith.subf %cst_15, %8 : f32
    %39 = vector.broadcast %38 : f32 to vector<8x1xf32>
    %40 = arith.mulf %37, %39 : vector<8x1xf32>
    %41 = arith.addf %35, %40 : vector<8x1xf32>
    %cst_16 = arith.constant 1.000000e+00 : f32
    %42 = vector.broadcast %cst_16 : f32 to vector<8x1xf32>
    %43 = arith.subf %42, %41 : vector<8x1xf32>
    %44 = vector.broadcast %12 : f32 to vector<8x1xf32>
    %45 = arith.mulf %44, %33 : vector<8x1xf32>
    %46 = arith.mulf %43, %43 : vector<8x1xf32>
    %47 = arith.mulf %45, %46 : vector<8x1xf32>
    %c0_17 = arith.constant 0 : index
    %c0_18 = arith.constant 0 : index
    %c0_19 = arith.constant 0 : index
    %48 = vector.load %arg6[%c0_17, %c0_18, %c0_19] : memref<1x8x1xf32, #tpu.memory_space<vmem>>, vector<1x8x1xf32>
    %49 = vector.shape_cast %48 : vector<1x8x1xf32> to vector<8x1xf32>
    %50 = arith.addf %49, %47 : vector<8x1xf32>
    %c0_20 = arith.constant 0 : index
    %c0_21 = arith.constant 0 : index
    %c0_22 = arith.constant 0 : index
    %51 = vector.load %arg6[%c0_20, %c0_21, %c0_22] : memref<1x8x1xf32, #tpu.memory_space<vmem>>, vector<1x8x1xf32>
    %52 = vector.shape_cast %51 : vector<1x8x1xf32> to vector<8x1xf32>
    %53 = vector.shape_cast %50 : vector<8x1xf32> to vector<1x8x1xf32>
    tpu.vector_store %arg6[%c0_20, %c0_21, %c0_22], %53 {strides = array<i32>} : memref<1x8x1xf32, #tpu.memory_space<vmem>>, vector<1x8x1xf32>,
    return
  }
  func.func @transform_0(%arg0: i32, %arg1: i32) -> (i32, i32, i32) {
    %c0_i32 = arith.constant 0 : i32
    %c0_i32_0 = arith.constant 0 : i32
    return %arg0, %arg1, %c0_i32 : i32, i32, i32
  }
  func.func @transform_1(%arg0: i32, %arg1: i32) -> (i32, i32) {
    %c0_i32 = arith.constant 0 : i32
    %c0_i32_0 = arith.constant 0 : i32
    %c0_i32_1 = arith.constant 0 : i32
    return %c0_i32, %c0_i32_0 : i32, i32
  }
  func.func @transform_2(%arg0: i32, %arg1: i32) -> i32 {
    %c0_i32 = arith.constant 0 : i32
    %c0_i32_0 = arith.constant 0 : i32
    return %c0_i32 : i32
  }
  func.func @transform_3(%arg0: i32, %arg1: i32) -> (i32, i32) {
    %c0_i32 = arith.constant 0 : i32
    %c0_i32_0 = arith.constant 0 : i32
    %c0_i32_1 = arith.constant 0 : i32
    return %c0_i32, %c0_i32_0 : i32, i32
  }
  func.func @transform_4(%arg0: i32, %arg1: i32) -> (i32, i32, i32) {
    %c0_i32 = arith.constant 0 : i32
    %c0_i32_0 = arith.constant 0 : i32
    %c0_i32_1 = arith.constant 0 : i32
    return %arg0, %c0_i32, %c0_i32_0 : i32, i32, i32
  }
}

</mosaic_0001>

<llo_original>
// kernel: tpu_custom_call.1
$region0: #{tpu_custom_call.1}
  #allocation0 [shape = 'u32[]', space=smem, size = 0x4, offset = 0x4, fixed_abs, tag = 'smem constant byte address 0x4 - core index']
  #allocation1 [shape = 'u32[144,128]{1,0:T(1,128)}', space=vmem, size = 0x12000, scoped, tag = 'internal scratch']
  #allocation2 [shape = 'f32[1,1]{1,0:T(1,128)S(6)}', space=smem, size = 0x200, scoped, tag = 'scoped memory for tpu_custom_call.1']
  %s0 = inlined_call_operand.vmem [shape: bf16[2,8,32], index: 0, kind: input, shape index: {}]
  %s1 = inlined_call_operand.vmem [shape: bf16[32,1], index: 1, kind: input, shape index: {}]
  %s2 = inlined_call_operand.vmem [shape: f32[2], index: 2, kind: input, shape index: {}]
  %s3 = inlined_call_operand.<no memory space> [shape: f32[1,1], index: 3, kind: input, shape index: {}]
  %s4 = inlined_call_operand.vmem [shape: f32[2,8,1], index: 4, kind: output, shape index: {}]
  %s5 = sld [smem:[#allocation0]]
  $region57: #{tpu_custom_call.1} parent=0
    _
  %s7 = ssub.s32 1, %s5
  %s8 = scalar_select 0, %s7, %s5
  %9 = sst [smem:[#allocation2]] %s3
  $region1: #{tpu_custom_call.1} parent=0
    #allocation3 [shape = 'u8[512]{0}', space=smem, size = 0x200, scoped, tag = 'input window, operand 2, single buffered']
    #allocation4 [shape = 's32[2]{0}', space=sflag, size = 0x8, scoped, tag = 'scoped memory for tpu_custom_call.1']
    %10 = vsyncpa [#allocation4], 0
    loop: start=0, step=1, limit=4
    $region2: #{tpu_custom_call.1} parent=1 // loop_pre_header
      _
    $region3: #{tpu_custom_call.1} parent=1 // loop_header
      %s12 = sphi 0, %s16
      %p13 = scmp.ge.s32.totalorder %s12, 4
      %s19 = sphi 0, %s31
      %s20 = sphi 0, %s27
      %s21 = sphi 0, %s19
      %s22 = sphi 0, %s20
      %s23 = sphi 0, %s21
      %s24 = sphi 0, %s22
      %s36 = sphi 0, %s38
      %s39 = sphi 0, %s36
      %s40 = sphi 0, %s39
      %s56 = sphi 0, %s40
      %s60 = sphi 0, %s60
      %s62 = sphi 0, %s60
      %s63 = sphi 0, %s62
      %s77 = sphi 0, %s63
      %s81 = sphi 0, %s81
      %s83 = sphi 0, %s81
      %s84 = sphi 0, %s83
      %s98 = sphi 0, %s84
      %s102 = sphi 0, %s102
      %s104 = sphi 0, %s102
      %s105 = sphi 0, %s104
      %s119 = sphi 0, %s105
      %s125 = sphi 0, %s127
      %s128 = sphi 0, %s125
      %s129 = sphi 0, %s128
      %s145 = sphi 0, %s129
    $region4: #{tpu_custom_call.1} parent=1 // loop_header_branch
      %15 = sbr.rel (%p13) target = $region8
    $region5: #{tpu_custom_call.1} parent=1 // loop_body
      %s17 = ssub.s32 %s12, 1
      %s18 = ssub.s32 %s12, 2
      %s25 = sadd.s32 1, %s20
      %p26 = scmp.ge.s32.totalorder %s25, 1
      %s27 = scalar_select %p26, 0, %s25
      %s28 = sadd.s32 1, %s19
      %s29 = scalar_select %p26, %s28, %s19
      %p30 = scmp.ge.s32.totalorder %s29, 2
      %s31 = scalar_select %p30, 0, %s29
      %s32 = ssub.s32 %s19, %s31
      %s33 = ssub.s32 %s20, %s27
      %s34 = sor.u32 %s32, %s33
      %p35 = scmp.eq.s32.totalorder %s34, 0
      %s37 = sadd.s32 %s36, 1
      %s38 = scalar_select %p35, %s36, %s37
      %p41 = pneg %p35
      %p42 = scmp.eq.s32.totalorder %s12, 1
      %p43 = por %p41, %p42
      %p44 = scmp.ne.s32.totalorder %s36, %s39
      %p45 = scmp.eq.s32.totalorder %s12, 0
      %p46 = por %p44, %p45
      %p47 = scmp.ne.s32.totalorder %s36, %s39
      %p48 = scmp.eq.s32.totalorder %s17, 1
      %p49 = por %p47, %p48
      %p50 = scmp.ne.s32.totalorder %s39, %s40
      %p51 = scmp.eq.s32.totalorder %s17, 0
      %p52 = por %p50, %p51
      %p53 = scmp.ne.s32.totalorder %s39, %s40
      %p54 = scmp.eq.s32.totalorder %s18, 1
      %p55 = por %p53, %p54
      %p57 = scmp.ne.s32.totalorder %s40, %s56
      %p58 = scmp.eq.s32.totalorder %s18, 0
      %p59 = por %p57, %p58
      %s61 = sadd.s32 %s60, 1
      %p64 = scmp.eq.s32.totalorder %s12, 1
      %p65 = scmp.ne.s32.totalorder %s60, %s62
      %p66 = scmp.eq.s32.totalorder %s12, 0
      %p67 = por %p65, %p66
      %p68 = scmp.ne.s32.totalorder %s60, %s62
      %p69 = scmp.eq.s32.totalorder %s17, 1
      %p70 = por %p68, %p69
      %p71 = scmp.ne.s32.totalorder %s62, %s63
      %p72 = scmp.eq.s32.totalorder %s17, 0
      %p73 = por %p71, %p72
      %p74 = scmp.ne.s32.totalorder %s62, %s63
      %p75 = scmp.eq.s32.totalorder %s18, 1
      %p76 = por %p74, %p75
      %p78 = scmp.ne.s32.totalorder %s63, %s77
      %p79 = scmp.eq.s32.totalorder %s18, 0
      %p80 = por %p78, %p79
      %s82 = sadd.s32 %s81, 1
      %p85 = scmp.eq.s32.totalorder %s12, 1
      %p86 = scmp.ne.s32.totalorder %s81, %s83
      %p87 = scmp.eq.s32.totalorder %s12, 0
      %p88 = por %p86, %p87
      %p89 = scmp.ne.s32.totalorder %s81, %s83
      %p90 = scmp.eq.s32.totalorder %s17, 1
      %p91 = por %p89, %p90
      %p92 = scmp.ne.s32.totalorder %s83, %s84
      %p93 = scmp.eq.s32.totalorder %s17, 0
      %p94 = por %p92, %p93
      %p95 = scmp.ne.s32.totalorder %s83, %s84
      %p96 = scmp.eq.s32.totalorder %s18, 1
      %p97 = por %p95, %p96
      %p99 = scmp.ne.s32.totalorder %s84, %s98
      %p100 = scmp.eq.s32.totalorder %s18, 0
      %p101 = por %p99, %p100
      %s103 = sadd.s32 %s102, 1
      %p106 = scmp.eq.s32.totalorder %s12, 1
      %p107 = scmp.ne.s32.totalorder %s102, %s104
      %p108 = scmp.eq.s32.totalorder %s12, 0
      %p109 = por %p107, %p108
      %p110 = scmp.ne.s32.totalorder %s102, %s104
      %p111 = scmp.eq.s32.totalorder %s17, 1
      %p112 = por %p110, %p111
      %p113 = scmp.ne.s32.totalorder %s104, %s105
      %p114 = scmp.eq.s32.totalorder %s17, 0
      %p115 = por %p113, %p114
      %p116 = scmp.ne.s32.totalorder %s104, %s105
      %p117 = scmp.eq.s32.totalorder %s18, 1
      %p118 = por %p116, %p117
      %p120 = scmp.ne.s32.totalorder %s105, %s119
      %p121 = scmp.eq.s32.totalorder %s18, 0
      %p122 = por %p120, %p121
      %s123 = ssub.s32 %s19, %s31
      %p124 = scmp.eq.s32.totalorder %s123, 0
      %s126 = sadd.s32 %s125, 1
      %s127 = scalar_select %p124, %s125, %s126
      %p130 = pneg %p124
      %p131 = scmp.eq.s32.totalorder %s12, 1
      %p132 = por %p130, %p131
      %p133 = scmp.ne.s32.totalorder %s125, %s128
      %p134 = scmp.eq.s32.totalorder %s12, 0
      %p135 = por %p133, %p134
      %p136 = scmp.ne.s32.totalorder %s125, %s128
      %p137 = scmp.eq.s32.totalorder %s17, 1
      %p138 = por %p136, %p137
      %p139 = scmp.ne.s32.totalorder %s128, %s129
      %p140 = scmp.eq.s32.totalorder %s17, 0
      %p141 = por %p139, %p140
      %p142 = scmp.ne.s32.totalorder %s128, %s129
      %p143 = scmp.eq.s32.totalorder %s18, 1
      %p144 = por %p142, %p143
      %p146 = scmp.ne.s32.totalorder %s129, %s145
      %p147 = scmp.eq.s32.totalorder %s18, 0
      %p148 = por %p146, %p147
      %p149 = scmp.le.s32.totalorder 1, %s12
      %p150 = scmp.lt.s32.totalorder %s12, 3
      %p151 = pnand %p149, %p150
      %p152 = pneg %p151
      // Predicated region
      $region9: #{tpu_custom_call.1} parent=5 // pred_check
        _
      $region10: #{tpu_custom_call.1} parent=5 // pred_check_branch
        %154 = sbr.rel (%p151) target = $region12
      $region11: #{tpu_custom_call.1} parent=5 // pred_region
        %s155 = ssub.s32 %s12, 1
        // Predicated region
        $region13: #{tpu_custom_call.1} parent=11 // pred_check
          %p156 = pneg %p73
        $region14: #{tpu_custom_call.1} parent=11 // pred_check_branch
          %158 = sbr.rel (%p156) target = $region16
        $region15: #{tpu_custom_call.1} parent=11 // pred_region
          _
        $region16: #{tpu_custom_call.1} parent=11 // pred_fallthru
          _
        // Predicated region
        $region17: #{tpu_custom_call.1} parent=11 // pred_check
          %p159 = pneg %p94
        $region18: #{tpu_custom_call.1} parent=11 // pred_check_branch
          %161 = sbr.rel (%p159) target = $region20
        $region19: #{tpu_custom_call.1} parent=11 // pred_region
          %s163 = ssub.s32 16, 16
          %164 = vsyncadd [#allocation4], %s163
          %s166 = sshll.u32 %s2, 4
          %s167 = int_to_ptr.vmem [resolvable:$true] %s166
          %169 = dma.vmem_to_smem %s167, 16, [#allocation3], [#allocation4]
        $region20: #{tpu_custom_call.1} parent=11 // pred_fallthru
          _
        // Predicated region
        $region21: #{tpu_custom_call.1} parent=11 // pred_check
          %p170 = pneg %p115
        $region22: #{tpu_custom_call.1} parent=11 // pred_check_branch
          %172 = sbr.rel (%p170) target = $region24
        $region23: #{tpu_custom_call.1} parent=11 // pred_region
          _
        $region24: #{tpu_custom_call.1} parent=11 // pred_fallthru
          _
      $region12: #{tpu_custom_call.1} parent=5 // pred_fallthru
        _
      %p173 = scmp.lt.s32.totalorder %s12, 2
      // Predicated region
      $region25: #{tpu_custom_call.1} parent=5 // pred_check
        %p174 = pneg %p173
      $region26: #{tpu_custom_call.1} parent=5 // pred_check_branch
        %176 = sbr.rel (%p174) target = $region28
      $region27: #{tpu_custom_call.1} parent=5 // pred_region
        // Predicated region
        $region29: #{tpu_custom_call.1} parent=27 // pred_check
          %p177 = pneg %p46
        $region30: #{tpu_custom_call.1} parent=27 // pred_check_branch
          %179 = sbr.rel (%p177) target = $region32
        $region31: #{tpu_custom_call.1} parent=27 // pred_region
          %p180 = scmp.lt.s32.totalorder %s19, 1
          %s181 = scalar_select %p180, %s19, 1
          %p182 = scmp.lt.s32.totalorder %s20, 0
          %s183 = scalar_select %p182, %s20, 0
          %s184 = sadd.s32 %s183, %s181
          %s185 = smul.addr %s184, 4
          %s186 = scalar_lea.vmem %s0, %s185
        $region32: #{tpu_custom_call.1} parent=27 // pred_fallthru
          _
      $region28: #{tpu_custom_call.1} parent=5 // pred_fallthru
        _
      %p187 = scmp.le.s32.totalorder 1, %s12
      %p188 = scmp.lt.s32.totalorder %s12, 3
      %p189 = pnand %p187, %p188
      %p190 = pneg %p189
      // Predicated region
      $region33: #{tpu_custom_call.1} parent=5 // pred_check
        _
      $region34: #{tpu_custom_call.1} parent=5 // pred_check_branch
        %192 = sbr.rel (%p189) target = $region36
      $region35: #{tpu_custom_call.1} parent=5 // pred_region
        %s193 = ssub.s32 %s12, 1
        // Predicated region
        $region37: #{tpu_custom_call.1} parent=35 // pred_check
          %p194 = pneg %p94
        $region38: #{tpu_custom_call.1} parent=35 // pred_check_branch
          %196 = sbr.rel (%p194) target = $region40
        $region39: #{tpu_custom_call.1} parent=35 // pred_region
          %197 = dma.done [#allocation4], 16
        $region40: #{tpu_custom_call.1} parent=35 // pred_fallthru
          _
        %198 = sfence
        %p199 = scmp.lt.s32.totalorder %s21, 1
        %s200 = scalar_select %p199, %s21, 1
        %p201 = scmp.lt.s32.totalorder %s22, 0
        %s202 = scalar_select %p201, %s22, 0
        %s203 = sadd.s32 %s202, %s200
        %s204 = smul.addr %s203, 4
        %s205 = scalar_lea.vmem %s0, %s204
        %p206 = pneg %p52
        %p207 = pneg %p49
        %p208 = pneg %p73
        %p209 = pneg %p70
        %p210 = pneg %p94
        %p211 = pneg %p91
        %p212 = pneg %p115
        %p213 = pneg %p112
        %p214 = pneg %p141
        %p215 = pneg %p138
        %p216 = scmp.lt.s32.totalorder %s21, 1
        %s217 = scalar_select %p216, %s21, 1
        %s218 = smul.addr %s217, 8
        %s219 = scalar_lea.vmem %s4, %s218
        %p220 = scmp.lt.s32.totalorder %s21, 1
        %s221 = scalar_select %p220, %s21, 1
        %p222 = scmp.lt.s32.totalorder %s22, 0
        %s223 = scalar_select %p222, %s22, 0
        %s224 = sadd.s32 %s223, %s221
        %s225 = smul.addr %s224, 4
        %s226 = scalar_lea.vmem %s0, %s225
        %p227 = scmp.lt.s32.totalorder %s21, 1
        %s228 = scalar_select %p227, %s21, 1
        %s229 = smul.addr %s228, 8
        %s230 = scalar_lea.vmem %s4, %s229
        %p232 = scmp.eq.s32.totalorder %s22, 0
        // Predicated region
        $region41: #{tpu_custom_call.1} parent=35 // pred_check
          %p233 = pneg %p232
        $region42: #{tpu_custom_call.1} parent=35 // pred_check_branch
          %235 = sbr.rel (%p233) target = $region44
        $region43: #{tpu_custom_call.1} parent=35 // pred_region
          %vm236 = vcmask 7168
          %237 = vst.msk [vmem:[%s230] sm:$0xff] %vm236, 0.0
        $region44: #{tpu_custom_call.1} parent=35 // pred_fallthru
          _
        %v238 = vld [vmem:[%s226] sm:$0xf]
        %v239 = vld [vmem:[%s1] sm:$0xf]
        %v240 = vld [vmem:[%s1 + $0x4] sm:$0xf]
        %v241 = vld [vmem:[%s1 + $0x8] sm:$0xf]
        %v242 = vld [vmem:[%s1 + $0xc] sm:$0xf]
        %s243 = sld [smem:[#allocation2]]
        %s244 = sld [smem:[#allocation3 + %s21]]
        %s245 = smul.f32 %s244, 0.35
        %s246 = ssub.f32 1.0, %s244
        %s247 = smul.f32 %s246, 0.65
        %s248 = sadd.f32 %s245, %s247
        %v249 = vstv %s243
        %v254 = vunpack.c.l.b16 %v239
        %v255 = vunpack.c.l.b16 %v240
        %v256 = vunpack.c.l.b16 %v241
        %v257 = vunpack.c.l.b16 %v242
        %v258 = vpack.c.b16 %v255, %v254
        %v259 = vpack.c.b16 %v257, %v256
        %vm262 = vcmask 261120
        %v264 = vsel %vm262, %v238, 0
        %266 = vmatprep.subr.bf16.mxu0 0
        %267 = vmatpush1.bf16.msra.mxu0 %v258
        %268 = vmatprep.subr.bf16.mxu0 0
        %269 = vmatpush1.bf16.msra.mxu0 %v259
        %270 = vmatprep.subr.bf16.mxu0 0
        %271 = vmatpush1.bf16.msra.mxu0 0
        %272 = vmatprep.subr.bf16.mxu0 0
        %273 = vmatpush1.bf16.msra.mxu0 0
        %274 = vmatprep.subr.bf16.mxu0 0
        %275 = vmatpush1.bf16.msra.mxu0 0
        %276 = vmatprep.subr.bf16.mxu0 0
        %277 = vmatpush1.bf16.msra.mxu0 0
        %278 = vmatprep.subr.bf16.mxu0 0
        %279 = vmatpush1.bf16.msra.mxu0 0
        %280 = vmatprep.subr.bf16.mxu0 0
        %281 = vmatpush1.bf16.msra.mxu0 0
        %282 = vmatprep.subr.bf16.mxu0 0
        %283 = vmatpush1.bf16.msra.mxu0 0
        %284 = vmatprep.subr.bf16.mxu0 0
        %285 = vmatpush1.bf16.msra.mxu0 0
        %286 = vmatprep.subr.bf16.mxu0 0
        %287 = vmatpush1.bf16.msra.mxu0 0
        %288 = vmatprep.subr.bf16.mxu0 0
        %289 = vmatpush1.bf16.msra.mxu0 0
        %290 = vmatprep.subr.bf16.mxu0 0
        %291 = vmatpush1.bf16.msra.mxu0 0
        %292 = vmatprep.subr.bf16.mxu0 0
        %293 = vmatpush1.bf16.msra.mxu0 0
        %294 = vmatprep.subr.bf16.mxu0 0
        %295 = vmatpush1.bf16.msra.mxu0 0
        %296 = vmatprep.subr.bf16.mxu0 0
        %297 = vmatpush1.bf16.msra.mxu0 0
        %298 = vmatprep.mubr.bf16.mxu0 0
        %299 = vmatmul.mubr.bf16.gmra.mrb[0].mxu0 %v264
        %v300 = vpop.f32.mrb[0].mxu0
        %v301 = vadd.f32 %v249, %v300
        %v302 = vpop.f32.mrb[0].mxu0
        %v303 = vpop.f32.mrb[0].mxu0
        %v304 = vpop.f32.mrb[0].mxu0
        %305 = vdwg.mxu0
        %v306 = vand.u32 2147483647, %v301
        %v307 = vsub.f32 0.0, %v306
        %v308 = vmul.f32 %v307, 1.442695
        %v309 = vpow.pop %v308
        %v310 = vadd.f32 %v309, 1.0
        %v311 = vrcp.pop %v310
        %vm312 = vcmp.ge.f32.partialorder %v301, 0.0
        %v313 = vmul.f32 %v309, %v311
        %v314 = vsel %vm312, %v311, %v313
        %v315 = vmax.f32 %v301, 0.0
        %v316 = vstv %s244
        %v317 = vmul.f32 %v301, %v316
        %v318 = vsub.f32 %v315, %v317
        %v319 = vadd.f32 %v309, 1.0
        %v320 = vlog2.pop %v319
        %v321 = vmul.f32 %v320, 0.6931472
        %v322 = vmul.f32 -0.5, %v309
        %v323 = vadd.f32 %v322, 1.0
        %v324 = vmul.f32 %v323, %v309
        %v325 = vand.u32 2147483647, %v309
        %vm326 = vcmp.lt.f32.partialorder %v325, 0.0004427343
        %v327 = vsel %vm326, %v324, %v321
        %v328 = vadd.f32 %v318, %v327
        %v329 = vmul.f32 %v314, %v316
        %v330 = vsub.f32 1.0, %v314
        %v331 = vstv %s246
        %v332 = vmul.f32 %v330, %v331
        %v333 = vadd.f32 %v329, %v332
        %v334 = vsub.f32 1.0, %v333
        %v335 = vstv %s248
        %v336 = vmul.f32 %v335, %v328
        %v337 = vmul.f32 %v334, %v334
        %v338 = vmul.f32 %v336, %v337
        %v339 = vld [vmem:[%s230] sm:$0xff]
        %v340 = vadd.f32 %v339, %v338
        %vm341 = vcmask 7168
        %342 = vst.msk [vmem:[%s230] sm:$0xff] %vm341, %v340
        %p343 = scmp.lt.s32.totalorder %s21, 1
        %s344 = scalar_select %p343, %s21, 1
        %s345 = smul.addr %s344, 8
        %s346 = scalar_lea.vmem %s4, %s345
        // Predicated region
        $region45: #{tpu_custom_call.1} parent=35 // pred_check
          %p347 = pneg %p138
        $region46: #{tpu_custom_call.1} parent=35 // pred_check_branch
          %349 = sbr.rel (%p347) target = $region48
        $region47: #{tpu_custom_call.1} parent=35 // pred_region
          _
        $region48: #{tpu_custom_call.1} parent=35 // pred_fallthru
          _
      $region36: #{tpu_custom_call.1} parent=5 // pred_fallthru
        _
      %p350 = scmp.le.s32.totalorder 2, %s12
      // Predicated region
      $region49: #{tpu_custom_call.1} parent=5 // pred_check
        %p351 = pneg %p350
      $region50: #{tpu_custom_call.1} parent=5 // pred_check_branch
        %353 = sbr.rel (%p351) target = $region52
      $region51: #{tpu_custom_call.1} parent=5 // pred_region
        %s354 = ssub.s32 %s12, 2
        // Predicated region
        $region53: #{tpu_custom_call.1} parent=51 // pred_check
          %p355 = pneg %p144
        $region54: #{tpu_custom_call.1} parent=51 // pred_check_branch
          %357 = sbr.rel (%p355) target = $region56
        $region55: #{tpu_custom_call.1} parent=51 // pred_region
          %p358 = scmp.lt.s32.totalorder %s23, 1
          %s359 = scalar_select %p358, %s23, 1
          %s360 = smul.addr %s359, 8
          %s361 = scalar_lea.vmem %s4, %s360
        $region56: #{tpu_custom_call.1} parent=51 // pred_fallthru
          _
      $region52: #{tpu_custom_call.1} parent=5 // pred_fallthru
        _
    $region6: #{tpu_custom_call.1} parent=1 // loop_footer
      %s16 = sadd.s32 1, %s12
    $region7: #{tpu_custom_call.1} parent=1 // loop_footer_branch
      %11 = sbr.rel target = $region3
    $region8: #{tpu_custom_call.1} parent=1 // loop_exit
      _
    %362 = vsyncpa [#allocation4], 1
    %s363 = scalar_lea.sflag [#allocation4], 1
    %364 = vsyncpa %s363, 1

</llo_original>
